<compile_context>
chip_gen: v7x
topology: tpu7x:2x2x1
jax: 0.10.0
libtpu: 0.0.40
codegen_flags: <defaults>
</compile_context>

<pallas_src>
import functools
import math

import jax
import jax.numpy as jnp
from jax import lax
from jax.experimental import pallas as pl
from jax.experimental.pallas import tpu as pltpu


def _round_up(x: int, m: int) -> int:
    return ((x + m - 1) // m) * m


# ----------------------------------------------------------------------------
# Kernel 1: fused linear projection  y = x @ W + b
# ----------------------------------------------------------------------------
def _linear_kernel(x_ref, w_ref, b_ref, o_ref):
    acc = jnp.dot(x_ref[...], w_ref[...], preferred_element_type=jnp.float32)
    o_ref[...] = (acc + b_ref[...]).astype(o_ref.dtype)


def pallas_linear(x2d, w, b, *, max_rows_per_step=256):
    """x2d: (M, K), w: (K, N), b: (N,) -> (M, N)."""
    M, K = x2d.shape
    Kw, N = w.shape
    assert K == Kw
    tm = min(_round_up(M, 8), max_rows_per_step)
    m_pad = _round_up(M, tm)
    x_p = jnp.pad(x2d, ((0, m_pad - M), (0, 0))) if m_pad != M else x2d

    out = pl.pallas_call(
        _linear_kernel,
        out_shape=jax.ShapeDtypeStruct((m_pad, N), x2d.dtype),
        grid=(m_pad // tm,),
        in_specs=[
            pl.BlockSpec((tm, K), lambda i: (i, 0)),
            pl.BlockSpec((K, N), lambda i: (0, 0)),   # weight resident each step
            pl.BlockSpec((1, N), lambda i: (0, 0)),   # bias
        ],
        out_specs=pl.BlockSpec((tm, N), lambda i: (i, 0)),
        compiler_params=pltpu.CompilerParams(dimension_semantics=("parallel",)),
        cost_estimate=pl.CostEstimate(
            flops=int(2 * m_pad * K * N),
            transcendentals=0,
            bytes_accessed=int(4 * (m_pad * K + K * N + N + m_pad * N))),
    )(x_p, w, b.reshape(1, N))
    return out[:M]


# ----------------------------------------------------------------------------
# Kernel 2: fused relative-position attention for one (batch, head) pair
# ----------------------------------------------------------------------------
def _attn_rel_kernel(q_ref, k_ref, v_ref, rel_ref, u_ref, vb_ref, mask_ref,
                     o_ref, *, scale):
    q = q_ref[0]          # (Lq, d)
    k = k_ref[0]          # (Lk, d)
    val = v_ref[0]        # (Lk, d)
    rel = rel_ref[0]      # (Lq, Lk, d)
    u_p = u_ref[0]        # (1, d)
    v_p = vb_ref[0]       # (1, d)
    msk = mask_ref[0]     # (1, Lk)  1.0 = keep, 0.0 = masked

    # Content score: A_C[i, j] = sum_d (q + u)[i, d] * k[j, d]     -> MXU
    a_c = lax.dot_general(q + u_p, k, (((1,), (1,)), ((), ())),
                          preferred_element_type=jnp.float32)

    # Position score: B_D[i, j] = sum_d (q + v)[i, d] * rel[i, j, d]
    qv = q + v_p                                   # (Lq, d)
    b_d = jnp.sum(qv[:, None, :] * rel, axis=-1)   # (Lq, Lk)

    scores = (a_c + b_d) * scale
    scores = scores + jnp.where(msk > 0.0, 0.0, -1e15)   # broadcast over Lq

    # Numerically stable softmax along keys.
    m = jnp.max(scores, axis=-1, keepdims=True)
    p = jnp.exp(scores - m)
    s = jnp.sum(p, axis=-1, keepdims=True)
    attn = p / s
    # TODO(synk): attention dropout not implemented (inference path).

    out = jnp.dot(attn, val, preferred_element_type=jnp.float32)   # (Lq, d)
    o_ref[0] = out.astype(o_ref.dtype)


def multi_head_attention_rel(key_in, query_in, value_in, pos, key_mask, params,
                             num_heads, scaled=True):
    """Pallas equivalent of MultiHeadAttentionRel.forward."""
    B, Lq, hidden = query_in.shape
    Lk = key_in.shape[1]
    H = num_heads
    d = hidden // H
    assert d * H == hidden

    # ---- projections (Pallas matmul kernels) -------------------------------
    q = pallas_linear(query_in.reshape(-1, hidden), params["w_q"], params["b_q"])
    k = pallas_linear(key_in.reshape(-1, hidden), params["w_k"], params["b_k"])
    v = pallas_linear(value_in.reshape(-1, hidden), params["w_v"], params["b_v"])
    r = pallas_linear(pos.reshape(-1, hidden), params["w_r"], params["b_r"])

    # ---- layout glue (index plumbing only): split heads, fold (batch, head) -
    q = q.reshape(B, Lq, H, d).transpose(0, 2, 1, 3).reshape(B * H, Lq, d)
    k = k.reshape(B, Lk, H, d).transpose(0, 2, 1, 3).reshape(B * H, Lk, d)
    v = v.reshape(B, Lk, H, d).transpose(0, 2, 1, 3).reshape(B * H, Lk, d)
    r = r.reshape(B, Lq, Lk, H, d).transpose(0, 3, 1, 2, 4).reshape(B * H, Lq, Lk, d)

    u3 = params["u"].reshape(H, 1, d).astype(jnp.float32)
    v3 = params["v"].reshape(H, 1, d).astype(jnp.float32)
    mask3 = key_mask.reshape(B, 1, Lk).astype(jnp.float32)

    scale = (1.0 / math.sqrt(d)) if scaled else 1.0
    bh = B * H
    flops = bh * (3 * 2 * Lq * Lk * d + 6 * Lq * Lk)
    bytes_accessed = 4 * bh * (2 * Lk * d + Lq * d + Lq * Lk * d + Lq * d) \
        + 4 * (B * Lk + 2 * H * d)

    out = pl.pallas_call(
        functools.partial(_attn_rel_kernel, scale=scale),
        out_shape=jax.ShapeDtypeStruct((bh, Lq, d), jnp.float32),
        grid=(bh,),
        in_specs=[
            pl.BlockSpec((1, Lq, d), lambda g: (g, 0, 0)),        # q
            pl.BlockSpec((1, Lk, d), lambda g: (g, 0, 0)),        # k
            pl.BlockSpec((1, Lk, d), lambda g: (g, 0, 0)),        # v
            pl.BlockSpec((1, Lq, Lk, d), lambda g: (g, 0, 0, 0)),  # rel
            pl.BlockSpec((1, 1, d), lambda g: (g % H, 0, 0)),     # u  (per head)
            pl.BlockSpec((1, 1, d), lambda g: (g % H, 0, 0)),     # v  (per head)
            pl.BlockSpec((1, 1, Lk), lambda g: (g // H, 0, 0)),   # key mask (per batch)
        ],
        out_specs=pl.BlockSpec((1, Lq, d), lambda g: (g, 0, 0)),
        compiler_params=pltpu.CompilerParams(dimension_semantics=("parallel",)),
        cost_estimate=pl.CostEstimate(
            flops=int(flops),
            transcendentals=int(bh * Lq * Lk),
            bytes_accessed=int(bytes_accessed)),
    )(q, k, v, r, u3, v3, mask3)

    # (B*H, Lq, d) -> (B, Lq, hidden)
    return out.reshape(B, H, Lq, d).transpose(0, 2, 1, 3).reshape(B, Lq, hidden)


# ----------------------------------------------------------------------------
# Pure-JAX reference of the PyTorch forward (for correctness check).
# ----------------------------------------------------------------------------
def reference_forward(key_in, query_in, value_in, pos, key_mask, params,
                      num_heads, scaled=True):
    hi = lax.Precision.HIGHEST
    lin = lambda x, w, b: jnp.einsum("...i,io->...o", x, w, precision=hi) + b
    k = lin(key_in, params["w_k"], params["b_k"])
    q = lin(query_in, params["w_q"], params["b_q"])
    v = lin(value_in, params["w_v"], params["b_v"])
    r = lin(pos, params["w_r"], params["b_r"])
    B, Lq, hidden = q.shape
    Lk = k.shape[1]
    d = hidden // num_heads
    k = k.reshape(B, Lk, num_heads, d).transpose(0, 2, 1, 3)
    q = q.reshape(B, Lq, num_heads, d).transpose(0, 2, 1, 3)
    v = v.reshape(B, Lk, num_heads, d).transpose(0, 2, 1, 3)
    r = r.reshape(B, Lq, Lk, num_heads, d)
    u_ = params["u"][None, :, None, :]
    v_ = params["v"][None, :, None, :]
    a_c = jnp.einsum("bhid,bhjd->bhij", q + u_, k, precision=hi)
    b_d = jnp.einsum("bhid,bijhd->bhij", q + v_, r, precision=hi)
    scores = a_c + b_d
    if scaled:
        scores = scores / math.sqrt(d)
    mask = key_mask[:, None, None, :]
    scores = jnp.where(mask > 0, scores, -1e15)
    attn = jax.nn.softmax(scores, axis=-1)
    out = jnp.einsum("bhij,bhjd->bhid", attn, v, precision=hi)
    return out.transpose(0, 2, 1, 3).reshape(B, Lq, hidden)


if __name__ == "__main__":
    hidden, num_heads = 32, 4
    B, L = 2, 8

    root = jax.random.PRNGKey(0)
    ks = jax.random.split(root, 16)

    def init(k, shape, s=0.1):
        return jax.random.normal(k, shape, jnp.float32) * s

    params = {
        "w_q": init(ks[0], (hidden, hidden)), "b_q": init(ks[1], (hidden,)),
        "w_k": init(ks[2], (hidden, hidden)), "b_k": init(ks[3], (hidden,)),
        "w_v": init(ks[4], (hidden, hidden)), "b_v": init(ks[5], (hidden,)),
        "w_r": init(ks[6], (hidden, hidden)), "b_r": init(ks[7], (hidden,)),
        "u": init(ks[8], (num_heads, hidden // num_heads), 1.0),
        "v": init(ks[9], (num_heads, hidden // num_heads), 1.0),
    }

    key_in = jax.random.normal(ks[10], (B, L, hidden), jnp.float32)
    query_in = jax.random.normal(ks[11], (B, L, hidden), jnp.float32)
    value_in = jax.random.normal(ks[12], (B, L, hidden), jnp.float32)
    pos = jax.random.normal(ks[13], (B, L, L, hidden), jnp.float32)
    # key_mask: batch 0 fully valid, batch 1 has its last two keys padded out.
    key_mask = (jnp.arange(L)[None, :]
                < jnp.array([L, L - 2])[:, None]).astype(jnp.int32)

    out = multi_head_attention_rel(key_in, query_in, value_in, pos, key_mask,
                                   params, num_heads, scaled=True)
    out = jax.block_until_ready(out)

    ref = reference_forward(key_in, query_in, value_in, pos, key_mask, params,
                            num_heads, scaled=True)
    assert out.shape == (B, L, hidden), out.shape
    max_diff = float(jnp.max(jnp.abs(out - ref)))
    assert jnp.allclose(out, ref, atol=1e-2, rtol=1e-2), f"mismatch: {max_diff}"

    print("KERNEL_OK")
</pallas_src>

<mosaic_0001>
module attributes {stable_mosaic.version = 11 : i64} {
  func.func @_linear_kernel(%arg0: i32, %arg1: memref<16x32xf32, #tpu.memory_space<vmem>>, %arg2: memref<32x32xf32, #tpu.memory_space<vmem>>, %arg3: memref<1x32xf32, #tpu.memory_space<vmem>>, %arg4: memref<16x32xf32, #tpu.memory_space<vmem>>) attributes {dimension_semantics = [#tpu.dimension_semantics<parallel>], iteration_bounds = array<i64: 1>, scalar_prefetch = 0 : i64, scratch_operands = 0 : i64, tpu.core_type = #tpu.core_type<tc>, window_params = [{transform_indices = @transform_0, window_bounds = array<i64: 16, 32>}, {pipeline_mode = #tpu.pipeline_mode<synchronous>, transform_indices = @transform_1, window_bounds = array<i64: 32, 32>}, {pipeline_mode = #tpu.pipeline_mode<synchronous>, transform_indices = @transform_2, window_bounds = array<i64: 1, 32>}, {transform_indices = @transform_3, window_bounds = array<i64: 16, 32>}]} {
    %c0 = arith.constant 0 : index
    %c0_0 = arith.constant 0 : index
    %0 = vector.load %arg1[%c0, %c0_0] : memref<16x32xf32, #tpu.memory_space<vmem>>, vector<16x32xf32>
    %c0_1 = arith.constant 0 : index
    %c0_2 = arith.constant 0 : index
    %1 = vector.load %arg2[%c0_1, %c0_2] : memref<32x32xf32, #tpu.memory_space<vmem>>, vector<32x32xf32>
    %cst = arith.constant dense<0.000000e+00> : vector<16x32xf32>
    %2 = tpu.matmul %0, %1, %cst {dimension_numbers = #tpu.dot_dimension_numbers<[1], [0], [0], [1], [0, 0, 1, 1], [], []>} : vector<16x32xf32>, vector<32x32xf32>, vector<16x32xf32> -> vector<16x32xf32>
    %c0_3 = arith.constant 0 : index
    %c0_4 = arith.constant 0 : index
    %3 = vector.load %arg3[%c0_3, %c0_4] : memref<1x32xf32, #tpu.memory_space<vmem>>, vector<1x32xf32>
    %4 = vector.broadcast %3 : vector<1x32xf32> to vector<16x32xf32>
    %5 = arith.addf %2, %4 : vector<16x32xf32>
    %c0_5 = arith.constant 0 : index
    %c0_6 = arith.constant 0 : index
    %6 = vector.load %arg4[%c0_5, %c0_6] : memref<16x32xf32, #tpu.memory_space<vmem>>, vector<16x32xf32>
    tpu.vector_store %arg4[%c0_5, %c0_6], %5 {strides = array<i32>} : memref<16x32xf32, #tpu.memory_space<vmem>>, vector<16x32xf32>,
    return
  }
  func.func @transform_0(%arg0: i32) -> (i32, i32) {
    %c0_i32 = arith.constant 0 : i32
    %c0_i32_0 = arith.constant 0 : i32
    return %arg0, %c0_i32 : i32, i32
  }
  func.func @transform_1(%arg0: i32) -> (i32, i32) {
    %c0_i32 = arith.constant 0 : i32
    %c0_i32_0 = arith.constant 0 : i32
    %c0_i32_1 = arith.constant 0 : i32
    return %c0_i32, %c0_i32_0 : i32, i32
  }
  func.func @transform_2(%arg0: i32) -> (i32, i32) {
    %c0_i32 = arith.constant 0 : i32
    %c0_i32_0 = arith.constant 0 : i32
    %c0_i32_1 = arith.constant 0 : i32
    return %c0_i32, %c0_i32_0 : i32, i32
  }
  func.func @transform_3(%arg0: i32) -> (i32, i32) {
    %c0_i32 = arith.constant 0 : i32
    %c0_i32_0 = arith.constant 0 : i32
    return %arg0, %c0_i32 : i32, i32
  }
}

</mosaic_0001>

<llo_original>
// kernel: tpu_custom_call.1
$region0: #{tpu_custom_call.1}
  #allocation0 [shape = 'u32[]', space=smem, size = 0x4, offset = 0x4, fixed_abs, tag = 'smem constant byte address 0x4 - core index']
  #allocation1 [shape = 'u32[144,128]{1,0:T(1,128)}', space=vmem, size = 0x12000, scoped, tag = 'internal scratch']
  %s0 = inlined_call_operand.hbm [shape: f32[16,32], index: 0, kind: input, shape index: {}]
  %s1 = inlined_call_operand.hbm [shape: f32[32,32], index: 1, kind: input, shape index: {}]
  %s2 = inlined_call_operand.vmem [shape: f32[1,32], index: 2, kind: input, shape index: {}]
  %s3 = inlined_call_operand.hbm [shape: f32[16,32], index: 3, kind: output, shape index: {}]
  %s4 = sld [smem:[#allocation0]]
  $region30: #{tpu_custom_call.1} parent=0
    _
  %s6 = ssub.s32 1, %s4
  %s7 = scalar_select 0, %s6, %s4
  $region1: #{tpu_custom_call.1} parent=0
    #allocation2 [shape = 'u8[8192]{0}', space=vmem, size = 0x2000, scoped, tag = 'input window, operand 0, single buffered']
    #allocation3 [shape = 's32[1]{0}', space=sflag, size = 0x4, scoped, tag = 'scoped memory for tpu_custom_call.1']
    #allocation4 [shape = 's32[1]{0}', space=sflag, size = 0x4, scoped, tag = 'scoped memory for tpu_custom_call.1']
    #allocation5 [shape = 'u8[16384]{0}', space=vmem, size = 0x4000, scoped, tag = 'input window, operand 1, single buffered']
    #allocation6 [shape = 's32[1]{0}', space=sflag, size = 0x4, scoped, tag = 'scoped memory for tpu_custom_call.1']
    #allocation7 [shape = 'u8[8192]{0}', space=vmem, size = 0x2000, scoped, tag = 'output window, operand 0, single buffered']
    %8 = vsyncpa [#allocation3], 0
    %9 = vsyncpa [#allocation6], 0
    %10 = vsyncpa [#allocation4], 0
    // Predicated region
    $region2: #{tpu_custom_call.1} parent=1 // pred_check
      _
    $region3: #{tpu_custom_call.1} parent=1 // pred_check_branch
      %12 = sbr.rel (0) target = $region5
    $region4: #{tpu_custom_call.1} parent=1 // pred_region
      %s14 = ssub.s32 256, 256
      %15 = vsyncadd [#allocation3], %s14
      %s16 = sshll.u32 [#allocation2], 4
      %s17 = int_to_ptr.vmem [resolvable:$true] %s16
      %22 = dma.hbm_to_vmem [thread:$0]  %s0, 256, %s17, [#allocation3], 128, 128, 8
    $region5: #{tpu_custom_call.1} parent=1 // pred_fallthru
      _
    // Predicated region
    $region6: #{tpu_custom_call.1} parent=1 // pred_check
      _
    $region7: #{tpu_custom_call.1} parent=1 // pred_check_branch
      %24 = sbr.rel (0) target = $region9
    $region8: #{tpu_custom_call.1} parent=1 // pred_region
      %s26 = ssub.s32 512, 512
      %27 = vsyncadd [#allocation6], %s26
      %s28 = sshll.u32 [#allocation5], 4
      %s29 = int_to_ptr.vmem [resolvable:$true] %s28
      %34 = dma.hbm_to_vmem [thread:$0]  %s1, 512, %s29, [#allocation6], 128, 128, 8
    $region9: #{tpu_custom_call.1} parent=1 // pred_fallthru
      _
    // Predicated region
    $region10: #{tpu_custom_call.1} parent=1 // pred_check
      _
    $region11: #{tpu_custom_call.1} parent=1 // pred_check_branch
      %36 = sbr.rel (0) target = $region13
    $region12: #{tpu_custom_call.1} parent=1 // pred_region
      _
    $region13: #{tpu_custom_call.1} parent=1 // pred_fallthru
      _
    // Predicated region
    $region14: #{tpu_custom_call.1} parent=1 // pred_check
      _
    $region15: #{tpu_custom_call.1} parent=1 // pred_check_branch
      %38 = sbr.rel (0) target = $region17
    $region16: #{tpu_custom_call.1} parent=1 // pred_region
      %39 = dma.done [#allocation3], 256
    $region17: #{tpu_custom_call.1} parent=1 // pred_fallthru
      _
    // Predicated region
    $region18: #{tpu_custom_call.1} parent=1 // pred_check
      _
    $region19: #{tpu_custom_call.1} parent=1 // pred_check_branch
      %41 = sbr.rel (0) target = $region21
    $region20: #{tpu_custom_call.1} parent=1 // pred_region
      %42 = dma.done [#allocation6], 512
    $region21: #{tpu_custom_call.1} parent=1 // pred_fallthru
      _
    %v43 = vld [vmem:[#allocation2] sm:$0xff]
    %v44 = vld [vmem:[#allocation2 + $0x8] sm:$0xff]
    %v45 = vld [vmem:[#allocation5] sm:$0xff]
    %v46 = vld [vmem:[#allocation5 + $0x8] sm:$0xff]
    %v47 = vld [vmem:[#allocation5 + $0x10] sm:$0xff]
    %v48 = vld [vmem:[#allocation5 + $0x18] sm:$0xff]
    %v49 = vld [vmem:[%s2] sm:$0x1]
    %v51 = vlaneseq
    %v52 = vshrl.u32 %v51, 7
    %v53 = vsub.s32 0, %v52
    %v54 = vrot.slane %v49, %v53
    %vm56 = vcmask 261120
    %v58 = vsel %vm56, %v43, 0
    %v61 = vsel %vm56, %v44, 0
    %63 = vmatprep.subr.mxu0 0.0
    %64 = vmatpush1.msra.mxu0 %v45
    %65 = vmatprep.subr.mxu0 0.0
    %66 = vmatpush1.msra.mxu0 %v46
    %67 = vmatprep.subr.mxu0 0.0
    %68 = vmatpush1.msra.mxu0 %v47
    %69 = vmatprep.subr.mxu0 0.0
    %70 = vmatpush1.msra.mxu0 %v48
    %71 = vmatprep.subr.mxu0 0.0
    %72 = vmatpush1.msra.mxu0 0.0
    %73 = vmatprep.subr.mxu0 0.0
    %74 = vmatpush1.msra.mxu0 0.0
    %75 = vmatprep.subr.mxu0 0.0
    %76 = vmatpush1.msra.mxu0 0.0
    %77 = vmatprep.subr.mxu0 0.0
    %78 = vmatpush1.msra.mxu0 0.0
    %79 = vmatprep.subr.mxu0 0.0
    %80 = vmatpush1.msra.mxu0 0.0
    %81 = vmatprep.subr.mxu0 0.0
    %82 = vmatpush1.msra.mxu0 0.0
    %83 = vmatprep.subr.mxu0 0.0
    %84 = vmatpush1.msra.mxu0 0.0
    %85 = vmatprep.subr.mxu0 0.0
    %86 = vmatpush1.msra.mxu0 0.0
    %87 = vmatprep.subr.mxu0 0.0
    %88 = vmatpush1.msra.mxu0 0.0
    %89 = vmatprep.subr.mxu0 0.0
    %90 = vmatpush1.msra.mxu0 0.0
    %91 = vmatprep.subr.mxu0 0.0
    %92 = vmatpush1.msra.mxu0 0.0
    %93 = vmatprep.subr.mxu0 0.0
    %94 = vmatpush1.msra.mxu0 0.0
    %95 = vmatprep.subr.mxu0 0.0
    %96 = vmatpush1.msra.mxu0 0.0
    %97 = vmatprep.subr.mxu0 0.0
    %98 = vmatpush1.msra.mxu0 0.0
    %99 = vmatprep.subr.mxu0 0.0
    %100 = vmatpush1.msra.mxu0 0.0
    %101 = vmatprep.subr.mxu0 0.0
    %102 = vmatpush1.msra.mxu0 0.0
    %103 = vmatprep.subr.mxu0 0.0
    %104 = vmatpush1.msra.mxu0 0.0
    %105 = vmatprep.subr.mxu0 0.0
    %106 = vmatpush1.msra.mxu0 0.0
    %107 = vmatprep.subr.mxu0 0.0
    %108 = vmatpush1.msra.mxu0 0.0
    %109 = vmatprep.subr.mxu0 0.0
    %110 = vmatpush1.msra.mxu0 0.0
    %111 = vmatprep.subr.mxu0 0.0
    %112 = vmatpush1.msra.mxu0 0.0
    %113 = vmatprep.subr.mxu0 0.0
    %114 = vmatpush1.msra.mxu0 0.0
    %115 = vmatprep.subr.mxu0 0.0
    %116 = vmatpush1.msra.mxu0 0.0
    %117 = vmatprep.subr.mxu0 0.0
    %118 = vmatpush1.msra.mxu0 0.0
    %119 = vmatprep.subr.mxu0 0.0
    %120 = vmatpush1.msra.mxu0 0.0
    %121 = vmatprep.subr.mxu0 0.0
    %122 = vmatpush1.msra.mxu0 0.0
    %123 = vmatprep.subr.mxu0 0.0
    %124 = vmatpush1.msra.mxu0 0.0
    %125 = vmatprep.subr.mxu0 0.0
    %126 = vmatpush1.msra.mxu0 0.0
    %127 = vmatprep.mubr.f32.mxu0 0.0
    %128 = vmatmul.mubr.f32.gmra.mrb[0].mxu0 %v58
    %v129 = vpop.f32.mrb[0].mxu0
    %v130 = vadd.f32 %v54, %v129
    %v131 = vpop.f32.mrb[0].mxu0
    %132 = vmatprep.mubr.f32.mxu0 0.0
    %133 = vmatmul.mubr.f32.gmra.mrb[0].mxu0 %v61
    %v134 = vpop.f32.mrb[0].mxu0
    %v135 = vadd.f32 %v54, %v134
    %v136 = vpop.f32.mrb[0].mxu0
    %137 = vdwg.mxu0
    %138 = vst.msk [vmem:[#allocation7] sm:$0xff] %vm56, %v130
    %139 = vst.msk [vmem:[#allocation7 + $0x8] sm:$0xff] %vm56, %v135
    // Predicated region
    $region22: #{tpu_custom_call.1} parent=1 // pred_check
      _
    $region23: #{tpu_custom_call.1} parent=1 // pred_check_branch
      %141 = sbr.rel (0) target = $region25
    $region24: #{tpu_custom_call.1} parent=1 // pred_region
      %s143 = ssub.s32 256, 256
      %144 = vsyncadd [#allocation4], %s143
      %s145 = sshll.u32 [#allocation7], 4
      %s146 = int_to_ptr.vmem [resolvable:$true] %s145
      %151 = dma.vmem_to_hbm [thread:$0]  %s146, 256, %s3, [#allocation4], 128, 128, 8
    $region25: #{tpu_custom_call.1} parent=1 // pred_fallthru
      _
    // Predicated region
    $region26: #{tpu_custom_call.1} parent=1 // pred_check
      _
    $region27: #{tpu_custom_call.1} parent=1 // pred_check_branch
      %153 = sbr.rel (0) target = $region29
    $region28: #{tpu_custom_call.1} parent=1 // pred_region
      %154 = dma.done [#allocation4], 256
    $region29: #{tpu_custom_call.1} parent=1 // pred_fallthru
      _
    %155 = vsyncpa [#allocation3], 1
    %156 = vsyncpa [#allocation6], 1
    %157 = vsyncpa [#allocation4], 1

</llo_original>
